<compile_context>
chip_gen: v6e
topology: v6e:2x2x1
jax: 0.10.0
libtpu: 0.0.40
codegen_flags: <defaults>
</compile_context>

<pallas_src>
import math

import jax
import jax.numpy as jnp
from jax.experimental import pallas as pl
from jax.experimental.pallas import tpu as pltpu


# -----------------------------------------------------------------------------
# Minimal Irreps stand-in: list of (mul, l, parity) with parity in {'e', 'o'}.
# Flat channel layout follows e3nn: blocks concatenated in order, each block
# is [mul, 2l+1] flattened (multiplicity-major).
# -----------------------------------------------------------------------------
def irreps_dim(irreps):
    return sum(mul * (2 * l + 1) for mul, l, _ in irreps)


def irreps_slices(irreps):
    out, s = [], 0
    for mul, l, _ in irreps:
        d = mul * (2 * l + 1)
        out.append((s, s + d))
        s += d
    return out


def _round_up(x, m):
    return -(-x // m) * m


# -----------------------------------------------------------------------------
# Parameter construction: dense weight + bias equivalent to LinearRS, with the
# output dimension zero-padded to a lane multiple (128) for unmasked stores.
# (The e3nn 'component' normalization and path_normalization='none' factors
#  cancel exactly for l x 0e -> l, so the per-path CG factor is 1.)
# -----------------------------------------------------------------------------
def make_linear_rs_params(key, irreps_in, irreps_out, dtype=jnp.float32,
                          lane_multiple=128):
    d_in, d_out = irreps_dim(irreps_in), irreps_dim(irreps_out)
    d_out_p = _round_up(d_out, lane_multiple) if lane_multiple else d_out
    in_sl, out_sl = irreps_slices(irreps_in), irreps_slices(irreps_out)

    # fan_in per output block = sum of matching input multiplicities
    # ('uvw' mode with mul(in2)=1), as in TensorProductRescale.init_rescale_bias.
    fan_in = [sum(mi for mi, li, pi in irreps_in if (li, pi) == (lo, po))
              for _, lo, po in irreps_out]

    w_full = jnp.zeros((d_in, d_out_p), dtype=jnp.float32)
    blocks = {}  # (in_idx, out_idx) -> [mul_in, mul_out] rescaled weight
    for oi, (mo, lo, po) in enumerate(irreps_out):
        sqrt_k = 1.0 / math.sqrt(fan_in[oi]) if fan_in[oi] > 0 else 0.0
        d = 2 * lo + 1
        for ii, (mi, li, pi) in enumerate(irreps_in):
            if (li, pi) != (lo, po):
                continue
            key, sub = jax.random.split(key)
            w_blk = jax.random.normal(sub, (mi, mo), dtype=jnp.float32) * sqrt_k
            blocks[(ii, oi)] = w_blk
            # dense[(u*d + m), (w*d + m')] = W[u, w] * delta(m, m')
            dense = jnp.kron(w_blk, jnp.eye(d, dtype=jnp.float32))
            si, _ = in_sl[ii]
            so, _ = out_sl[oi]
            w_full = w_full.at[si:si + mi * d, so:so + mo * d].set(dense)

    # Bias on l=0 even outputs only (zeros at init in torch; random here so the
    # add path is actually exercised -- semantics identical). Kept in f32.
    b_full = jnp.zeros((d_out_p,), dtype=jnp.float32)
    for oi, (mo, lo, po) in enumerate(irreps_out):
        if lo == 0 and po == 'e':
            key, sub = jax.random.split(key)
            so, eo = out_sl[oi]
            b_full = b_full.at[so:eo].set(
                jax.random.normal(sub, (eo - so,), dtype=jnp.float32))

    return w_full.astype(dtype), b_full, blocks


# -----------------------------------------------------------------------------
# Pallas kernel: one lane-dense MXU matmul + f32 bias per row tile.
# -----------------------------------------------------------------------------
def _linear_rs_kernel(x_ref, w_ref, b_ref, o_ref):
    acc = jnp.dot(x_ref[...], w_ref[...], preferred_element_type=jnp.float32)
    acc = acc + b_ref[...]                       # f32 bias, (1, D_out) broadcast
    o_ref[...] = acc.astype(o_ref.dtype)


def _vmem_limit_bytes():
    """Generation-aware VMEM request: ~half physical capacity, capped at 64 MiB."""
    try:
        cap = int(pltpu.get_tpu_info().vmem_capacity_bytes)
    except Exception:
        cap = 64 << 20                           # conservative (v7x per-core VMEM)
    return int(max(16 << 20, min(cap // 2, 64 << 20)))


def _choose_tile_n(n_rows, d_in, d_out_p, comp_itemsize, out_itemsize, *,
                   vmem_limit, resident_bytes, granule, cap=8192):
    """Largest row tile whose double-buffered X/OUT tiles fit next to the
    resident weight, multiple of `granule`, split >=2 ways for megacore."""
    per_row = 2 * (d_in * comp_itemsize + d_out_p * out_itemsize)
    avail = vmem_limit - resident_bytes - (2 << 20)            # 2 MiB headroom
    avail = max(avail, per_row * granule)
    t = max(granule, (avail // per_row // granule) * granule)
    t = min(t, cap)
    t = min(t, _round_up(n_rows, granule))                     # never exceed N
    if n_rows > granule:                       # >=2 grid steps -> both v7x TCs busy
        t = min(t, max(granule, _round_up(-(-n_rows // 2), granule)))
    return max(granule, t)


def linear_rs(x, w_full, b_full, *, out_dim=None, compute_dtype=None,
              out_dtype=None, tile_n=None):
    """x: [..., D_in] -> [..., out_dim] (out_dim defaults to w_full.shape[1])."""
    d_in, d_out_p = w_full.shape
    assert x.shape[-1] == d_in, (x.shape, d_in)
    lead = x.shape[:-1]

    comp_dt = jnp.dtype(compute_dtype) if compute_dtype is not None else x.dtype
    out_dt = jnp.dtype(out_dtype) if out_dtype is not None else x.dtype

    xf = x.reshape(-1, d_in).astype(comp_dt)
    w = w_full.astype(comp_dt)
    b = b_full.astype(jnp.float32).reshape(1, d_out_p)
    n = xf.shape[0]

    ci, co = jnp.dtype(comp_dt).itemsize, jnp.dtype(out_dt).itemsize
    granule = max(8, 32 // max(1, min(ci, co)))        # 8 for f32, 16 for bf16
    vmem_limit = _vmem_limit_bytes()
    # Budget conservatively assumes double-buffered W/bias even though we
    # request single buffering below.
    resident = 2 * (d_in * d_out_p * ci + d_out_p * 4)
    if tile_n is None:
        tile_n = _choose_tile_n(n, d_in, d_out_p, ci, co, vmem_limit=vmem_limit,
                                resident_bytes=resident, granule=granule)
    grid = (pl.cdiv(n, tile_n),)

    cost = pl.CostEstimate(
        flops=2 * n * d_in * d_out_p,
        transcendentals=0,
        bytes_accessed=(n * d_in * ci + n * d_out_p * co
                        + d_in * d_out_p * ci + d_out_p * 4))

    def _call(single_buffer_consts):
        const_kw = ({"pipeline_mode": pl.Buffered(1)}
                    if single_buffer_consts else {})
        return pl.pallas_call(
            _linear_rs_kernel,
            out_shape=jax.ShapeDtypeStruct((n, d_out_p), out_dt),
            grid_spec=pltpu.PrefetchScalarGridSpec(
                num_scalar_prefetch=0,
                grid=grid,
                in_specs=[
                    pl.BlockSpec((tile_n, d_in), lambda i: (i, 0)),     # row tile
                    pl.BlockSpec((d_in, d_out_p), lambda i: (0, 0),
                                 **const_kw),                           # resident W
                    pl.BlockSpec((1, d_out_p), lambda i: (0, 0),
                                 **const_kw),                           # resident bias
                ],
                out_specs=pl.BlockSpec((tile_n, d_out_p), lambda i: (i, 0)),
            ),
            compiler_params=pltpu.CompilerParams(
                dimension_semantics=("parallel",),
                vmem_limit_bytes=vmem_limit),
            cost_estimate=cost,
        )(xf, w, b)

    try:
        out = _call(True)           # single-buffered constant W / bias
    except Exception:
        out = _call(False)          # fall back to default double buffering

    if out_dim is None:
        out_dim = d_out_p
    if out_dim != d_out_p:
        out = out[:, :out_dim]      # drop lane-padding columns (fuses downstream)
    return out.reshape(*lead, out_dim)


# -----------------------------------------------------------------------------
# Pure-JAX reference mirroring the PyTorch forward block-by-block.
# -----------------------------------------------------------------------------
def linear_rs_ref(x, irreps_in, irreps_out, blocks, b_full):
    in_sl, out_sl = irreps_slices(irreps_in), irreps_slices(irreps_out)
    d_out = irreps_dim(irreps_out)
    lead = x.shape[:-1]
    xf = x.reshape(-1, x.shape[-1])
    n = xf.shape[0]
    outs = []
    for oi, (mo, lo, po) in enumerate(irreps_out):
        d = 2 * lo + 1
        acc = jnp.zeros((n, mo, d), dtype=jnp.float32)
        for ii, (mi, li, pi) in enumerate(irreps_in):
            if (ii, oi) not in blocks:
                continue
            si, ei = in_sl[ii]
            xb = xf[:, si:ei].astype(jnp.float32).reshape(n, mi, d)
            acc = acc + jnp.einsum('num,uw->nwm', xb, blocks[(ii, oi)],
                                   precision=jax.lax.Precision.HIGHEST)
        outs.append(acc.reshape(n, mo * d))
    out = jnp.concatenate(outs, axis=1) + b_full[:d_out].astype(jnp.float32)[None, :]
    return out.astype(jnp.float32).reshape(*lead, -1)


if __name__ == "__main__":
    # irreps_in  = "32x0e + 16x1e + 8x2e"      -> D_in  = 32 + 48 + 40 = 120
    # irreps_out = "16x0e + 8x1e + 4x1o + 4x2e" -> D_out = 16 + 24 + 12 + 20 = 72
    # (the 4x1o output has no matching input -> stays zero, as in e3nn;
    #  D_out is lane-padded 72 -> 128 inside make_linear_rs_params)
    irreps_in = [(32, 0, 'e'), (16, 1, 'e'), (8, 2, 'e')]
    irreps_out = [(16, 0, 'e'), (8, 1, 'e'), (4, 1, 'o'), (4, 2, 'e')]
    d_out_true = irreps_dim(irreps_out)

    key = jax.random.PRNGKey(0)
    kx, kw = jax.random.split(key)

    N = 40  # not a tile multiple: exercises Pallas ragged last-block masking
    x = jax.random.normal(kx, (N, irreps_dim(irreps_in)), dtype=jnp.float32)

    w_full, b_full, blocks = make_linear_rs_params(kw, irreps_in, irreps_out)
    ref = linear_rs_ref(x, irreps_in, irreps_out, blocks, b_full)

    # float32 path
    out = linear_rs(x, w_full, b_full, out_dim=d_out_true)
    out = jax.block_until_ready(out)
    assert out.shape == (N, d_out_true), out.shape
    max_err = float(jnp.max(jnp.abs(out.astype(jnp.float32) - ref)))
    assert jnp.allclose(out.astype(jnp.float32), ref, atol=1e-3, rtol=1e-3), \
        f"f32 mismatch: {max_err}"

    # bfloat16 compute/storage path (f32 MXU accumulation + f32 bias add)
    out_bf = linear_rs(x, w_full, b_full, out_dim=d_out_true,
                       compute_dtype=jnp.bfloat16, out_dtype=jnp.bfloat16)
    out_bf = jax.block_until_ready(out_bf)
    assert out_bf.shape == (N, d_out_true), out_bf.shape
    max_err_bf = float(jnp.max(jnp.abs(out_bf.astype(jnp.float32) - ref)))
    assert jnp.allclose(out_bf.astype(jnp.float32), ref, atol=5e-2, rtol=5e-2), \
        f"bf16 mismatch: {max_err_bf}"

    print("KERNEL_OK")
</pallas_src>

<mosaic_0001>
module attributes {stable_mosaic.version = 11 : i64} {
  func.func @_linear_rs_kernel(%arg0: i32, %arg1: memref<24x120xf32, #tpu.memory_space<vmem>>, %arg2: memref<120x128xf32, #tpu.memory_space<vmem>>, %arg3: memref<1x128xf32, #tpu.memory_space<vmem>>, %arg4: memref<24x128xf32, #tpu.memory_space<vmem>>) attributes {dimension_semantics = [#tpu.dimension_semantics<parallel>], iteration_bounds = array<i64: 2>, scalar_prefetch = 0 : i64, scratch_operands = 0 : i64, tpu.core_type = #tpu.core_type<tc>, window_params = [{transform_indices = @transform_0, window_bounds = array<i64: 24, 120>}, {pipeline_mode = #tpu.pipeline_mode<synchronous>, transform_indices = @transform_1, window_bounds = array<i64: 120, 128>}, {pipeline_mode = #tpu.pipeline_mode<synchronous>, transform_indices = @transform_2, window_bounds = array<i64: 1, 128>}, {transform_indices = @transform_3, window_bounds = array<i64: 24, 128>}]} {
    %c0 = arith.constant 0 : index
    %c0_0 = arith.constant 0 : index
    %0 = vector.load %arg1[%c0, %c0_0] : memref<24x120xf32, #tpu.memory_space<vmem>>, vector<24x120xf32>
    %c0_1 = arith.constant 0 : index
    %c0_2 = arith.constant 0 : index
    %1 = vector.load %arg2[%c0_1, %c0_2] : memref<120x128xf32, #tpu.memory_space<vmem>>, vector<120x128xf32>
    %cst = arith.constant dense<0.000000e+00> : vector<24x128xf32>
    %2 = tpu.matmul %0, %1, %cst {dimension_numbers = #tpu.dot_dimension_numbers<[1], [0], [0], [1], [0, 0, 1, 1], [], []>} : vector<24x120xf32>, vector<120x128xf32>, vector<24x128xf32> -> vector<24x128xf32>
    %c0_3 = arith.constant 0 : index
    %c0_4 = arith.constant 0 : index
    %3 = vector.load %arg3[%c0_3, %c0_4] : memref<1x128xf32, #tpu.memory_space<vmem>>, vector<1x128xf32>
    %4 = vector.broadcast %3 : vector<1x128xf32> to vector<24x128xf32>
    %5 = arith.addf %2, %4 : vector<24x128xf32>
    %c0_5 = arith.constant 0 : index
    %c0_6 = arith.constant 0 : index
    %6 = vector.load %arg4[%c0_5, %c0_6] : memref<24x128xf32, #tpu.memory_space<vmem>>, vector<24x128xf32>
    tpu.vector_store %arg4[%c0_5, %c0_6], %5 {strides = array<i32>} : memref<24x128xf32, #tpu.memory_space<vmem>>, vector<24x128xf32>,
    return
  }
  func.func @transform_0(%arg0: i32) -> (i32, i32) {
    %c0_i32 = arith.constant 0 : i32
    %c0_i32_0 = arith.constant 0 : i32
    return %arg0, %c0_i32 : i32, i32
  }
  func.func @transform_1(%arg0: i32) -> (i32, i32) {
    %c0_i32 = arith.constant 0 : i32
    %c0_i32_0 = arith.constant 0 : i32
    %c0_i32_1 = arith.constant 0 : i32
    return %c0_i32, %c0_i32_0 : i32, i32
  }
  func.func @transform_2(%arg0: i32) -> (i32, i32) {
    %c0_i32 = arith.constant 0 : i32
    %c0_i32_0 = arith.constant 0 : i32
    %c0_i32_1 = arith.constant 0 : i32
    return %c0_i32, %c0_i32_0 : i32, i32
  }
  func.func @transform_3(%arg0: i32) -> (i32, i32) {
    %c0_i32 = arith.constant 0 : i32
    %c0_i32_0 = arith.constant 0 : i32
    return %arg0, %c0_i32 : i32, i32
  }
}

module attributes {stable_mosaic.version = 11 : i64} {
  func.func @_linear_rs_kernel(%arg0: i32, %arg1: memref<24x120xf32, #tpu.memory_space<vmem>>, %arg2: memref<120x128xf32, #tpu.memory_space<vmem>>, %arg3: memref<1x128xf32, #tpu.memory_space<vmem>>, %arg4: memref<24x128xf32, #tpu.memory_space<vmem>>) attributes {dimension_semantics = [#tpu.dimension_semantics<parallel>], iteration_bounds = array<i64: 2>, scalar_prefetch = 0 : i64, scratch_operands = 0 : i64, tpu.core_type = #tpu.core_type<tc>, window_params = [{transform_indices = @transform_0, window_bounds = array<i64: 24, 120>}, {pipeline_mode = #tpu.pipeline_mode<synchronous>, transform_indices = @transform_1, window_bounds = array<i64: 120, 128>}, {pipeline_mode = #tpu.pipeline_mode<synchronous>, transform_indices = @transform_2, window_bounds = array<i64: 1, 128>}, {transform_indices = @transform_3, window_bounds = array<i64: 24, 128>}]} {
    %c0 = arith.constant 0 : index
    %c0_0 = arith.constant 0 : index
    %0 = vector.load %arg1[%c0, %c0_0] : memref<24x120xf32, #tpu.memory_space<vmem>>, vector<24x120xf32>
    %c0_1 = arith.constant 0 : index
    %c0_2 = arith.constant 0 : index
    %1 = vector.load %arg2[%c0_1, %c0_2] : memref<120x128xf32, #tpu.memory_space<vmem>>, vector<120x128xf32>
    %cst = arith.constant dense<0.000000e+00> : vector<24x128xf32>
    %2 = tpu.matmul %0, %1, %cst {dimension_numbers = #tpu.dot_dimension_numbers<[1], [0], [0], [1], [0, 0, 1, 1], [], []>} : vector<24x120xf32>, vector<120x128xf32>, vector<24x128xf32> -> vector<24x128xf32>
    %c0_3 = arith.constant 0 : index
    %c0_4 = arith.constant 0 : index
    %3 = vector.load %arg3[%c0_3, %c0_4] : memref<1x128xf32, #tpu.memory_space<vmem>>, vector<1x128xf32>
    %4 = vector.broadcast %3 : vector<1x128xf32> to vector<24x128xf32>
    %5 = arith.addf %2, %4 : vector<24x128xf32>
    %c0_5 = arith.constant 0 : index
    %c0_6 = arith.constant 0 : index
    %6 = vector.load %arg4[%c0_5, %c0_6] : memref<24x128xf32, #tpu.memory_space<vmem>>, vector<24x128xf32>
    tpu.vector_store %arg4[%c0_5, %c0_6], %5 {strides = array<i32>} : memref<24x128xf32, #tpu.memory_space<vmem>>, vector<24x128xf32>,
    return
  }
  func.func @transform_0(%arg0: i32) -> (i32, i32) {
    %c0_i32 = arith.constant 0 : i32
    %c0_i32_0 = arith.constant 0 : i32
    return %arg0, %c0_i32 : i32, i32
  }
  func.func @transform_1(%arg0: i32) -> (i32, i32) {
    %c0_i32 = arith.constant 0 : i32
    %c0_i32_0 = arith.constant 0 : i32
    %c0_i32_1 = arith.constant 0 : i32
    return %c0_i32, %c0_i32_0 : i32, i32
  }
  func.func @transform_2(%arg0: i32) -> (i32, i32) {
    %c0_i32 = arith.constant 0 : i32
    %c0_i32_0 = arith.constant 0 : i32
    %c0_i32_1 = arith.constant 0 : i32
    return %c0_i32, %c0_i32_0 : i32, i32
  }
  func.func @transform_3(%arg0: i32) -> (i32, i32) {
    %c0_i32 = arith.constant 0 : i32
    %c0_i32_0 = arith.constant 0 : i32
    return %arg0, %c0_i32 : i32, i32
  }
}

</mosaic_0001>

<llo_original>
// kernel: tpu_custom_call.1
$region0: #{tpu_custom_call.1}
  #allocation0 [shape = 'u32[]', space=smem, size = 0x4, offset = 0x4, fixed_abs, tag = 'smem constant byte address 0x4 - core index']
  #allocation1 [shape = 'u32[144,128]{1,0:T(1,128)}', space=vmem, size = 0x12000, scoped, tag = 'internal scratch']
  %s0 = inlined_call_operand.hbm [shape: f32[40,120], index: 0, kind: input, shape index: {}]
  %s1 = inlined_call_operand.hbm [shape: f32[120,128], index: 1, kind: input, shape index: {}]
  %s2 = inlined_call_operand.vmem [shape: f32[1,128], index: 2, kind: input, shape index: {}]
  %s3 = inlined_call_operand.hbm [shape: f32[40,128], index: 3, kind: output, shape index: {}]
  %s4 = sld [smem:[#allocation0]]
  $region53: #{tpu_custom_call.1} parent=0
    _
  %s6 = ssub.s32 1, %s4
  %s7 = scalar_select 0, %s6, %s4
  $region1: #{tpu_custom_call.1} parent=0
    #allocation2 [shape = 'u8[24576]{0}', space=vmem, size = 0x6000, scoped, tag = 'input window, operand 0']
    #allocation3 [shape = 's32[2]{0}', space=sflag, size = 0x8, scoped, tag = 'scoped memory for tpu_custom_call.1']
    #allocation4 [shape = 's32[2]{0}', space=sflag, size = 0x8, scoped, tag = 'scoped memory for tpu_custom_call.1']
    #allocation5 [shape = 'u8[61440]{0}', space=vmem, size = 0xf000, scoped, tag = 'input window, operand 1, single buffered']
    #allocation6 [shape = 's32[1]{0}', space=sflag, size = 0x4, scoped, tag = 'scoped memory for tpu_custom_call.1']
    #allocation7 [shape = 'u8[24576]{0}', space=vmem, size = 0x6000, scoped, tag = 'output window, operand 0']
    %8 = vsyncpa [#allocation3], 0
    %s9 = scalar_lea.sflag [#allocation3], 1
    %10 = vsyncpa %s9, 0
    %11 = vsyncpa [#allocation6], 0
    %12 = vsyncpa [#allocation4], 0
    %s13 = scalar_lea.sflag [#allocation4], 1
    %14 = vsyncpa %s13, 0
    loop: start=0, step=1, limit=4
    $region2: #{tpu_custom_call.1} parent=1 // loop_pre_header
      _
    $region3: #{tpu_custom_call.1} parent=1 // loop_header
      %s16 = sphi 0, %s20
      %p17 = scmp.ge.s32.totalorder %s16, 4
      %s26 = sphi 0, %s28
      %s29 = sphi 0, %s26
      %s30 = sphi 0, %s29
      %s46 = sphi 0, %s30
      %s50 = sphi 0, %s50
      %s52 = sphi 0, %s50
      %s53 = sphi 0, %s52
      %s67 = sphi 0, %s53
      %s71 = sphi 0, %s71
      %s73 = sphi 0, %s71
      %s74 = sphi 0, %s73
      %s88 = sphi 0, %s74
      %s94 = sphi 0, %s96
      %s97 = sphi 0, %s94
      %s98 = sphi 0, %s97
      %s114 = sphi 0, %s98
    $region4: #{tpu_custom_call.1} parent=1 // loop_header_branch
      %19 = sbr.rel (%p17) target = $region8
    $region5: #{tpu_custom_call.1} parent=1 // loop_body
      %s21 = ssub.s32 %s16, 1
      %s22 = ssub.s32 %s16, 2
      %s23 = sadd.s32 %s16, 1
      %s24 = ssub.s32 %s16, %s23
      %p25 = scmp.eq.s32.totalorder %s24, 0
      %s27 = sadd.s32 %s26, 1
      %s28 = scalar_select %p25, %s26, %s27
      %p31 = pneg %p25
      %p32 = scmp.eq.s32.totalorder %s16, 1
      %p33 = por %p31, %p32
      %p34 = scmp.ne.s32.totalorder %s26, %s29
      %p35 = scmp.eq.s32.totalorder %s16, 0
      %p36 = por %p34, %p35
      %p37 = scmp.ne.s32.totalorder %s26, %s29
      %p38 = scmp.eq.s32.totalorder %s21, 1
      %p39 = por %p37, %p38
      %p40 = scmp.ne.s32.totalorder %s29, %s30
      %p41 = scmp.eq.s32.totalorder %s21, 0
      %p42 = por %p40, %p41
      %p43 = scmp.ne.s32.totalorder %s29, %s30
      %p44 = scmp.eq.s32.totalorder %s22, 1
      %p45 = por %p43, %p44
      %p47 = scmp.ne.s32.totalorder %s30, %s46
      %p48 = scmp.eq.s32.totalorder %s22, 0
      %p49 = por %p47, %p48
      %s51 = sadd.s32 %s50, 1
      %p54 = scmp.eq.s32.totalorder %s16, 1
      %p55 = scmp.ne.s32.totalorder %s50, %s52
      %p56 = scmp.eq.s32.totalorder %s16, 0
      %p57 = por %p55, %p56
      %p58 = scmp.ne.s32.totalorder %s50, %s52
      %p59 = scmp.eq.s32.totalorder %s21, 1
      %p60 = por %p58, %p59
      %p61 = scmp.ne.s32.totalorder %s52, %s53
      %p62 = scmp.eq.s32.totalorder %s21, 0
      %p63 = por %p61, %p62
      %p64 = scmp.ne.s32.totalorder %s52, %s53
      %p65 = scmp.eq.s32.totalorder %s22, 1
      %p66 = por %p64, %p65
      %p68 = scmp.ne.s32.totalorder %s53, %s67
      %p69 = scmp.eq.s32.totalorder %s22, 0
      %p70 = por %p68, %p69
      %s72 = sadd.s32 %s71, 1
      %p75 = scmp.eq.s32.totalorder %s16, 1
      %p76 = scmp.ne.s32.totalorder %s71, %s73
      %p77 = scmp.eq.s32.totalorder %s16, 0
      %p78 = por %p76, %p77
      %p79 = scmp.ne.s32.totalorder %s71, %s73
      %p80 = scmp.eq.s32.totalorder %s21, 1
      %p81 = por %p79, %p80
      %p82 = scmp.ne.s32.totalorder %s73, %s74
      %p83 = scmp.eq.s32.totalorder %s21, 0
      %p84 = por %p82, %p83
      %p85 = scmp.ne.s32.totalorder %s73, %s74
      %p86 = scmp.eq.s32.totalorder %s22, 1
      %p87 = por %p85, %p86
      %p89 = scmp.ne.s32.totalorder %s74, %s88
      %p90 = scmp.eq.s32.totalorder %s22, 0
      %p91 = por %p89, %p90
      %s92 = ssub.s32 %s16, %s23
      %p93 = scmp.eq.s32.totalorder %s92, 0
      %s95 = sadd.s32 %s94, 1
      %s96 = scalar_select %p93, %s94, %s95
      %p99 = pneg %p93
      %p100 = scmp.eq.s32.totalorder %s16, 1
      %p101 = por %p99, %p100
      %p102 = scmp.ne.s32.totalorder %s94, %s97
      %p103 = scmp.eq.s32.totalorder %s16, 0
      %p104 = por %p102, %p103
      %p105 = scmp.ne.s32.totalorder %s94, %s97
      %p106 = scmp.eq.s32.totalorder %s21, 1
      %p107 = por %p105, %p106
      %p108 = scmp.ne.s32.totalorder %s97, %s98
      %p109 = scmp.eq.s32.totalorder %s21, 0
      %p110 = por %p108, %p109
      %p111 = scmp.ne.s32.totalorder %s97, %s98
      %p112 = scmp.eq.s32.totalorder %s22, 1
      %p113 = por %p111, %p112
      %p115 = scmp.ne.s32.totalorder %s98, %s114
      %p116 = scmp.eq.s32.totalorder %s22, 0
      %p117 = por %p115, %p116
      %p118 = scmp.le.s32.totalorder 1, %s16
      %p119 = scmp.lt.s32.totalorder %s16, 3
      %p120 = pnand %p118, %p119
      %p121 = pneg %p120
      // Predicated region
      $region9: #{tpu_custom_call.1} parent=5 // pred_check
        _
      $region10: #{tpu_custom_call.1} parent=5 // pred_check_branch
        %123 = sbr.rel (%p120) target = $region12
      $region11: #{tpu_custom_call.1} parent=5 // pred_region
        %s124 = ssub.s32 %s16, 1
        // Predicated region
        $region13: #{tpu_custom_call.1} parent=11 // pred_check
          %p125 = pneg %p63
        $region14: #{tpu_custom_call.1} parent=11 // pred_check_branch
          %127 = sbr.rel (%p125) target = $region16
        $region15: #{tpu_custom_call.1} parent=11 // pred_region
          %s129 = ssub.s32 1920, 1920
          %130 = vsyncadd [#allocation6], %s129
          %s131 = sshll.u32 [#allocation5], 4
          %s132 = int_to_ptr.vmem [resolvable:$true] %s131
          %137 = dma.hbm_to_vmem [thread:$0]  %s1, 1920, %s132, [#allocation6], 128, 128, 8
        $region16: #{tpu_custom_call.1} parent=11 // pred_fallthru
          _
        // Predicated region
        $region17: #{tpu_custom_call.1} parent=11 // pred_check
          %p138 = pneg %p84
        $region18: #{tpu_custom_call.1} parent=11 // pred_check_branch
          %140 = sbr.rel (%p138) target = $region20
        $region19: #{tpu_custom_call.1} parent=11 // pred_region
          _
        $region20: #{tpu_custom_call.1} parent=11 // pred_fallthru
          _
      $region12: #{tpu_custom_call.1} parent=5 // pred_fallthru
        _
      %p141 = scmp.lt.s32.totalorder %s16, 2
      // Predicated region
      $region21: #{tpu_custom_call.1} parent=5 // pred_check
        %p142 = pneg %p141
      $region22: #{tpu_custom_call.1} parent=5 // pred_check_branch
        %144 = sbr.rel (%p142) target = $region24
      $region23: #{tpu_custom_call.1} parent=5 // pred_region
        // Predicated region
        $region25: #{tpu_custom_call.1} parent=23 // pred_check
          %p145 = pneg %p36
        $region26: #{tpu_custom_call.1} parent=23 // pred_check_branch
          %147 = sbr.rel (%p145) target = $region28
        $region27: #{tpu_custom_call.1} parent=23 // pred_region
          %s148 = sand.u32 %s26, 1
          %s149 = scalar_lea.sflag [#allocation3], %s148
          %s150 = sand.u32 %s26, 1
          %s151 = smul.addr %s150, 24
          %s152 = scalar_lea.vmem [#allocation2], %s151
          %s153 = smul.u32 3, %s16
          %s154 = ssub.s32 5, %s153
          %p155 = scmp.lt.s32.totalorder %s154, 3
          %s156 = scalar_select %p155, %s154, 3
          %s157 = smul.u32 128, %s156
          %s159 = ssub.s32 384, %s157
          %160 = vsyncadd %s149, %s159
          %p161 = scmp.ne.s32.totalorder 0, %s157
          %s162 = smul.addr %s153, 128
          %s163 = scalar_lea.hbm %s0, %s162
          %s164 = smul.u32 8, %s156
          %s165 = sshll.u32 %s152, 4
          %s166 = int_to_ptr.vmem [resolvable:$true] %s165
          %s167 = sshll.u32 %s164, 4
          %171 = dma.hbm_to_vmem [thread:$0]  (%p161), %s163, %s167, %s166, %s149, 128, 128, 8
        $region28: #{tpu_custom_call.1} parent=23 // pred_fallthru
          _
      $region24: #{tpu_custom_call.1} parent=5 // pred_fallthru
        _
      %p172 = scmp.le.s32.totalorder 1, %s16
      %p173 = scmp.lt.s32.totalorder %s16, 3
      %p174 = pnand %p172, %p173
      %p175 = pneg %p174
      // Predicated region
      $region29: #{tpu_custom_call.1} parent=5 // pred_check
        _
      $region30: #{tpu_custom_call.1} parent=5 // pred_check_branch
        %177 = sbr.rel (%p174) target = $region32
      $region31: #{tpu_custom_call.1} parent=5 // pred_region
        %s178 = ssub.s32 %s16, 1
        %s179 = sand.u32 %s29, 1
        %s180 = scalar_lea.sflag [#allocation3], %s179
        %s181 = sand.u32 %s29, 1
        %s182 = smul.addr %s181, 24
        %s183 = scalar_lea.vmem [#allocation2], %s182
        // Predicated region
        $region33: #{tpu_custom_call.1} parent=31 // pred_check
          %p184 = pneg %p42
        $region34: #{tpu_custom_call.1} parent=31 // pred_check_branch
          %186 = sbr.rel (%p184) target = $region36
        $region35: #{tpu_custom_call.1} parent=31 // pred_region
          %187 = dma.done %s180, 384
        $region36: #{tpu_custom_call.1} parent=31 // pred_fallthru
          _
        // Predicated region
        $region37: #{tpu_custom_call.1} parent=31 // pred_check
          %p188 = pneg %p63
        $region38: #{tpu_custom_call.1} parent=31 // pred_check_branch
          %190 = sbr.rel (%p188) target = $region40
        $region39: #{tpu_custom_call.1} parent=31 // pred_region
          %191 = dma.done [#allocation6], 1920
        $region40: #{tpu_custom_call.1} parent=31 // pred_fallthru
          _
        %s192 = sand.u32 %s29, 1
        %s193 = scalar_lea.sflag [#allocation3], %s192
        %s194 = sand.u32 %s29, 1
        %s195 = smul.addr %s194, 24
        %s196 = scalar_lea.vmem [#allocation2], %s195
        %p197 = pneg %p42
        %p198 = pneg %p39
        %p199 = pneg %p63
        %p200 = pneg %p60
        %p201 = pneg %p84
        %p202 = pneg %p81
        %p203 = pneg %p110
        %p204 = pneg %p107
        %s205 = sand.u32 %s97, 1
        %s206 = scalar_lea.sflag [#allocation4], %s205
        %s207 = sand.u32 %s97, 1
        %s208 = smul.addr %s207, 24
        %s209 = scalar_lea.vmem [#allocation7], %s208
        %s210 = smul.u32 3, %s21
        %s211 = ssub.s32 5, %s210
        %p212 = scmp.lt.s32.totalorder %s211, 3
        %s213 = scalar_select %p212, %s211, 3
        %s214 = smul.u32 128, %s213
        %s215 = smul.u32 3, %s21
        %s216 = ssub.s32 5, %s215
        %p217 = scmp.lt.s32.totalorder %s216, 3
        %s218 = scalar_select %p217, %s216, 3
        %s219 = smul.u32 128, %s218
        %v220 = vld [vmem:[%s183] sm:$0xff]
        %v221 = vld [vmem:[%s183 + $0x8] sm:$0xff]
        %v222 = vld [vmem:[%s183 + $0x10] sm:$0xff]
        %v223 = vld [vmem:[#allocation5] sm:$0xff]
        %v224 = vld [vmem:[#allocation5 + $0x8] sm:$0xff]
        %v225 = vld [vmem:[#allocation5 + $0x10] sm:$0xff]
        %v226 = vld [vmem:[#allocation5 + $0x18] sm:$0xff]
        %v227 = vld [vmem:[#allocation5 + $0x20] sm:$0xff]
        %v228 = vld [vmem:[#allocation5 + $0x28] sm:$0xff]
        %v229 = vld [vmem:[#allocation5 + $0x30] sm:$0xff]
        %v230 = vld [vmem:[#allocation5 + $0x38] sm:$0xff]
        %v231 = vld [vmem:[#allocation5 + $0x40] sm:$0xff]
        %v232 = vld [vmem:[#allocation5 + $0x48] sm:$0xff]
        %v233 = vld [vmem:[#allocation5 + $0x50] sm:$0xff]
        %v234 = vld [vmem:[#allocation5 + $0x58] sm:$0xff]
        %v235 = vld [vmem:[#allocation5 + $0x60] sm:$0xff]
        %v236 = vld [vmem:[#allocation5 + $0x68] sm:$0xff]
        %v237 = vld [vmem:[#allocation5 + $0x70] sm:$0xff]
        %v238 = vld [vmem:[%s2] sm:$0x1]
        %v240 = vlaneseq
        %v241 = vshrl.u32 %v240, 7
        %v242 = vsub.s32 0, %v241
        %v243 = vrot.slane %v238, %v242
        %vm245 = vcmask 982016
        %v247 = vsel %vm245, %v220, 0
        %v250 = vsel %vm245, %v221, 0
        %v253 = vsel %vm245, %v222, 0
        %255 = vmatprep.subr.mxu0 0.0
        %256 = vmatpush1.msra.mxu0 0.0
        %257 = vmatprep.subr.mxu0 0.0
        %258 = vmatpush1.msra.mxu0 %v237
        %259 = vmatprep.subr.mxu0 0.0
        %260 = vmatpush1.msra.mxu0 %v236
        %261 = vmatprep.subr.mxu0 0.0
        %262 = vmatpush1.msra.mxu0 %v235
        %263 = vmatprep.subr.mxu0 0.0
        %264 = vmatpush1.msra.mxu0 %v234
        %265 = vmatprep.subr.mxu0 0.0
        %266 = vmatpush1.msra.mxu0 %v233
        %267 = vmatprep.subr.mxu0 0.0
        %268 = vmatpush1.msra.mxu0 %v232
        %269 = vmatprep.subr.mxu0 0.0
        %270 = vmatpush1.msra.mxu0 %v231
        %271 = vmatprep.subr.mxu0 0.0
        %272 = vmatpush1.msra.mxu0 %v230
        %273 = vmatprep.subr.mxu0 0.0
        %274 = vmatpush1.msra.mxu0 %v229
        %275 = vmatprep.subr.mxu0 0.0
        %276 = vmatpush1.msra.mxu0 %v228
        %277 = vmatprep.subr.mxu0 0.0
        %278 = vmatpush1.msra.mxu0 %v227
        %279 = vmatprep.subr.mxu0 0.0
        %280 = vmatpush1.msra.mxu0 %v226
        %281 = vmatprep.subr.mxu0 0.0
        %282 = vmatpush1.msra.mxu0 %v225
        %283 = vmatprep.subr.mxu0 0.0
        %284 = vmatpush1.msra.mxu0 %v224
        %285 = vmatprep.subr.mxu0 0.0
        %286 = vmatpush1.msra.mxu0 %v223
        %287 = vmatprep.subr.mxu0 0.0
        %288 = vmatpush2.msra.mxu0 0.0
        %289 = vmatprep.subr.mxu0 0.0
        %290 = vmatpush2.msra.mxu0 0.0
        %291 = vmatprep.subr.mxu0 0.0
        %292 = vmatpush2.msra.mxu0 0.0
        %293 = vmatprep.subr.mxu0 0.0
        %294 = vmatpush2.msra.mxu0 0.0
        %295 = vmatprep.subr.mxu0 0.0
        %296 = vmatpush2.msra.mxu0 0.0
        %297 = vmatprep.subr.mxu0 0.0
        %298 = vmatpush2.msra.mxu0 0.0
        %299 = vmatprep.subr.mxu0 0.0
        %300 = vmatpush2.msra.mxu0 0.0
        %301 = vmatprep.subr.mxu0 0.0
        %302 = vmatpush2.msra.mxu0 0.0
        %303 = vmatprep.subr.mxu0 0.0
        %304 = vmatpush2.msra.mxu0 0.0
        %305 = vmatprep.subr.mxu0 0.0
        %306 = vmatpush2.msra.mxu0 0.0
        %307 = vmatprep.subr.mxu0 0.0
        %308 = vmatpush2.msra.mxu0 0.0
        %309 = vmatprep.subr.mxu0 0.0
        %310 = vmatpush2.msra.mxu0 0.0
        %311 = vmatprep.subr.mxu0 0.0
        %312 = vmatpush2.msra.mxu0 0.0
        %313 = vmatprep.subr.mxu0 0.0
        %314 = vmatpush2.msra.mxu0 0.0
        %315 = vmatprep.subr.mxu0 0.0
        %316 = vmatpush2.msra.mxu0 0.0
        %317 = vmatprep.subr.mxu0 0.0
        %318 = vmatpush2.msra.mxu0 0.0
        %319 = vmatprep.mubr.f32.mxu0 0.0
        %320 = vmatmul.mubr.f32.gmra.mxu0 %v247
        %v321 = vpop.f32.mrf.mxu0
        %v322 = vadd.f32 %v243, %v321
        %v323 = vpop.f32.mrf.mxu0
        %324 = vmatprep.mubr.f32.mxu0 0.0
        %325 = vmatmul.mubr.f32.gmra.mxu0 %v250
        %v326 = vpop.f32.mrf.mxu0
        %v327 = vadd.f32 %v243, %v326
        %v328 = vpop.f32.mrf.mxu0
        %329 = vmatprep.mubr.f32.mxu0 0.0
        %330 = vmatmul.mubr.f32.gmra.mxu0 %v253
        %v331 = vpop.f32.mrf.mxu0
        %v332 = vadd.f32 %v243, %v331
        %v333 = vpop.f32.mrf.mxu0
        %334 = vdwg.mxu0
        %335 = vst [vmem:[%s209] sm:$0xff] %v322
        %336 = vst [vmem:[%s209 + $0x8] sm:$0xff] %v327
        %337 = vst [vmem:[%s209 + $0x10] sm:$0xff] %v332
        %s338 = sand.u32 %s97, 1
        %s339 = scalar_lea.sflag [#allocation4], %s338
        %s340 = sand.u32 %s97, 1
        %s341 = smul.addr %s340, 24
        %s342 = scalar_lea.vmem [#allocation7], %s341
        // Predicated region
        $region41: #{tpu_custom_call.1} parent=31 // pred_check
          %p343 = pneg %p107
        $region42: #{tpu_custom_call.1} parent=31 // pred_check_branch
          %345 = sbr.rel (%p343) target = $region44
        $region43: #{tpu_custom_call.1} parent=31 // pred_region
          %s346 = smul.u32 3, %s21
          %s347 = ssub.s32 5, %s346
          %p348 = scmp.lt.s32.totalorder %s347, 3
          %s349 = scalar_select %p348, %s347, 3
          %s350 = smul.u32 128, %s349
          %s352 = ssub.s32 384, %s350
          %353 = vsyncadd %s339, %s352
          %p354 = scmp.ne.s32.totalorder 0, %s350
          %s355 = smul.addr %s346, 128
          %s356 = scalar_lea.hbm %s3, %s355
          %s357 = smul.u32 8, %s349
          %s358 = sshll.u32 %s342, 4
          %s359 = int_to_ptr.vmem [resolvable:$true] %s358
          %s360 = sshll.u32 %s357, 4
          %364 = dma.vmem_to_hbm [thread:$0]  (%p354), %s359, %s360, %s356, %s339, 128, 128, 8
        $region44: #{tpu_custom_call.1} parent=31 // pred_fallthru
          _
      $region32: #{tpu_custom_call.1} parent=5 // pred_fallthru
        _
      %p365 = scmp.le.s32.totalorder 2, %s16
      // Predicated region
      $region45: #{tpu_custom_call.1} parent=5 // pred_check
        %p366 = pneg %p365
      $region46: #{tpu_custom_call.1} parent=5 // pred_check_branch
        %368 = sbr.rel (%p366) target = $region48
      $region47: #{tpu_custom_call.1} parent=5 // pred_region
        %s369 = ssub.s32 %s16, 2
        // Predicated region
        $region49: #{tpu_custom_call.1} parent=47 // pred_check
          %p370 = pneg %p113
        $region50: #{tpu_custom_call.1} parent=47 // pred_check_branch
          %372 = sbr.rel (%p370) target = $region52
        $region51: #{tpu_custom_call.1} parent=47 // pred_region
          %s373 = sand.u32 %s98, 1
          %s374 = scalar_lea.sflag [#allocation4], %s373
          %s375 = sand.u32 %s98, 1
          %s376 = smul.addr %s375, 24
          %s377 = scalar_lea.vmem [#allocation7], %s376
          %378 = dma.done %s374, 384
        $region52: #{tpu_custom_call.1} parent=47 // pred_fallthru
          _
      $region48: #{tpu_custom_call.1} parent=5 // pred_fallthru
        _
    $region6: #{tpu_custom_call.1} parent=1 // loop_footer
      %s20 = sadd.s32 1, %s16
    $region7: #{tpu_custom_call.1} parent=1 // loop_footer_branch
      %15 = sbr.rel target = $region3
    $region8: #{tpu_custom_call.1} parent=1 // loop_exit
      _
    %379 = vsyncpa [#allocation3], 1
    %s380 = scalar_lea.sflag [#allocation3], 1
    %381 = vsyncpa %s380, 1
    %382 = vsyncpa [#allocation6], 1
    %383 = vsyncpa [#allocation4], 1
    %s384 = scalar_lea.sflag [#allocation4], 1
    %385 = vsyncpa %s384, 1

// kernel: tpu_custom_call.1
$region0: #{tpu_custom_call.1}
  #allocation0 [shape = 'u32[]', space=smem, size = 0x4, offset = 0x4, fixed_abs, tag = 'smem constant byte address 0x4 - core index']
  #allocation1 [shape = 'u32[144,128]{1,0:T(1,128)}', space=vmem, size = 0x12000, scoped, tag = 'internal scratch']
  %s0 = inlined_call_operand.hbm [shape: f32[40,120], index: 0, kind: input, shape index: {}]
  %s1 = inlined_call_operand.hbm [shape: f32[120,128], index: 1, kind: input, shape index: {}]
  %s2 = inlined_call_operand.vmem [shape: f32[1,128], index: 2, kind: input, shape index: {}]
  %s3 = inlined_call_operand.hbm [shape: f32[40,128], index: 3, kind: output, shape index: {}]
  %s4 = sld [smem:[#allocation0]]
  $region53: #{tpu_custom_call.1} parent=0
    _
  %s6 = ssub.s32 1, %s4
  %s7 = scalar_select 0, %s6, %s4
  $region1: #{tpu_custom_call.1} parent=0
    #allocation2 [shape = 'u8[24576]{0}', space=vmem, size = 0x6000, scoped, tag = 'input window, operand 0']
    #allocation3 [shape = 's32[2]{0}', space=sflag, size = 0x8, scoped, tag = 'scoped memory for tpu_custom_call.1']
    #allocation4 [shape = 's32[2]{0}', space=sflag, size = 0x8, scoped, tag = 'scoped memory for tpu_custom_call.1']
    #allocation5 [shape = 'u8[61440]{0}', space=vmem, size = 0xf000, scoped, tag = 'input window, operand 1, single buffered']
    #allocation6 [shape = 's32[1]{0}', space=sflag, size = 0x4, scoped, tag = 'scoped memory for tpu_custom_call.1']
    #allocation7 [shape = 'u8[24576]{0}', space=vmem, size = 0x6000, scoped, tag = 'output window, operand 0']
    %8 = vsyncpa [#allocation3], 0
    %s9 = scalar_lea.sflag [#allocation3], 1
    %10 = vsyncpa %s9, 0
    %11 = vsyncpa [#allocation6], 0
    %12 = vsyncpa [#allocation4], 0
    %s13 = scalar_lea.sflag [#allocation4], 1
    %14 = vsyncpa %s13, 0
    loop: start=0, step=1, limit=4
    $region2: #{tpu_custom_call.1} parent=1 // loop_pre_header
      _
    $region3: #{tpu_custom_call.1} parent=1 // loop_header
      %s16 = sphi 0, %s20
      %p17 = scmp.ge.s32.totalorder %s16, 4
      %s26 = sphi 0, %s28
      %s29 = sphi 0, %s26
      %s30 = sphi 0, %s29
      %s46 = sphi 0, %s30
      %s50 = sphi 0, %s50
      %s52 = sphi 0, %s50
      %s53 = sphi 0, %s52
      %s67 = sphi 0, %s53
      %s71 = sphi 0, %s71
      %s73 = sphi 0, %s71
      %s74 = sphi 0, %s73
      %s88 = sphi 0, %s74
      %s94 = sphi 0, %s96
      %s97 = sphi 0, %s94
      %s98 = sphi 0, %s97
      %s114 = sphi 0, %s98
    $region4: #{tpu_custom_call.1} parent=1 // loop_header_branch
      %19 = sbr.rel (%p17) target = $region8
    $region5: #{tpu_custom_call.1} parent=1 // loop_body
      %s21 = ssub.s32 %s16, 1
      %s22 = ssub.s32 %s16, 2
      %s23 = sadd.s32 %s16, 1
      %s24 = ssub.s32 %s16, %s23
      %p25 = scmp.eq.s32.totalorder %s24, 0
      %s27 = sadd.s32 %s26, 1
      %s28 = scalar_select %p25, %s26, %s27
      %p31 = pneg %p25
      %p32 = scmp.eq.s32.totalorder %s16, 1
      %p33 = por %p31, %p32
      %p34 = scmp.ne.s32.totalorder %s26, %s29
      %p35 = scmp.eq.s32.totalorder %s16, 0
      %p36 = por %p34, %p35
      %p37 = scmp.ne.s32.totalorder %s26, %s29
      %p38 = scmp.eq.s32.totalorder %s21, 1
      %p39 = por %p37, %p38
      %p40 = scmp.ne.s32.totalorder %s29, %s30
      %p41 = scmp.eq.s32.totalorder %s21, 0
      %p42 = por %p40, %p41
      %p43 = scmp.ne.s32.totalorder %s29, %s30
      %p44 = scmp.eq.s32.totalorder %s22, 1
      %p45 = por %p43, %p44
      %p47 = scmp.ne.s32.totalorder %s30, %s46
      %p48 = scmp.eq.s32.totalorder %s22, 0
      %p49 = por %p47, %p48
      %s51 = sadd.s32 %s50, 1
      %p54 = scmp.eq.s32.totalorder %s16, 1
      %p55 = scmp.ne.s32.totalorder %s50, %s52
      %p56 = scmp.eq.s32.totalorder %s16, 0
      %p57 = por %p55, %p56
      %p58 = scmp.ne.s32.totalorder %s50, %s52
      %p59 = scmp.eq.s32.totalorder %s21, 1
      %p60 = por %p58, %p59
      %p61 = scmp.ne.s32.totalorder %s52, %s53
      %p62 = scmp.eq.s32.totalorder %s21, 0
      %p63 = por %p61, %p62
      %p64 = scmp.ne.s32.totalorder %s52, %s53
      %p65 = scmp.eq.s32.totalorder %s22, 1
      %p66 = por %p64, %p65
      %p68 = scmp.ne.s32.totalorder %s53, %s67
      %p69 = scmp.eq.s32.totalorder %s22, 0
      %p70 = por %p68, %p69
      %s72 = sadd.s32 %s71, 1
      %p75 = scmp.eq.s32.totalorder %s16, 1
      %p76 = scmp.ne.s32.totalorder %s71, %s73
      %p77 = scmp.eq.s32.totalorder %s16, 0
      %p78 = por %p76, %p77
      %p79 = scmp.ne.s32.totalorder %s71, %s73
      %p80 = scmp.eq.s32.totalorder %s21, 1
      %p81 = por %p79, %p80
      %p82 = scmp.ne.s32.totalorder %s73, %s74
      %p83 = scmp.eq.s32.totalorder %s21, 0
      %p84 = por %p82, %p83
      %p85 = scmp.ne.s32.totalorder %s73, %s74
      %p86 = scmp.eq.s32.totalorder %s22, 1
      %p87 = por %p85, %p86
      %p89 = scmp.ne.s32.totalorder %s74, %s88
      %p90 = scmp.eq.s32.totalorder %s22, 0
      %p91 = por %p89, %p90
      %s92 = ssub.s32 %s16, %s23
      %p93 = scmp.eq.s32.totalorder %s92, 0
      %s95 = sadd.s32 %s94, 1
      %s96 = scalar_select %p93, %s94, %s95
      %p99 = pneg %p93
      %p100 = scmp.eq.s32.totalorder %s16, 1
      %p101 = por %p99, %p100
      %p102 = scmp.ne.s32.totalorder %s94, %s97
      %p103 = scmp.eq.s32.totalorder %s16, 0
      %p104 = por %p102, %p103
      %p105 = scmp.ne.s32.totalorder %s94, %s97
      %p106 = scmp.eq.s32.totalorder %s21, 1
      %p107 = por %p105, %p106
      %p108 = scmp.ne.s32.totalorder %s97, %s98
      %p109 = scmp.eq.s32.totalorder %s21, 0
      %p110 = por %p108, %p109
      %p111 = scmp.ne.s32.totalorder %s97, %s98
      %p112 = scmp.eq.s32.totalorder %s22, 1
      %p113 = por %p111, %p112
      %p115 = scmp.ne.s32.totalorder %s98, %s114
      %p116 = scmp.eq.s32.totalorder %s22, 0
      %p117 = por %p115, %p116
      %p118 = scmp.le.s32.totalorder 1, %s16
      %p119 = scmp.lt.s32.totalorder %s16, 3
      %p120 = pnand %p118, %p119
      %p121 = pneg %p120
      // Predicated region
      $region9: #{tpu_custom_call.1} parent=5 // pred_check
        _
      $region10: #{tpu_custom_call.1} parent=5 // pred_check_branch
        %123 = sbr.rel (%p120) target = $region12
      $region11: #{tpu_custom_call.1} parent=5 // pred_region
        %s124 = ssub.s32 %s16, 1
        // Predicated region
        $region13: #{tpu_custom_call.1} parent=11 // pred_check
          %p125 = pneg %p63
        $region14: #{tpu_custom_call.1} parent=11 // pred_check_branch
          %127 = sbr.rel (%p125) target = $region16
        $region15: #{tpu_custom_call.1} parent=11 // pred_region
          %s129 = ssub.s32 1920, 1920
          %130 = vsyncadd [#allocation6], %s129
          %s131 = sshll.u32 [#allocation5], 4
          %s132 = int_to_ptr.vmem [resolvable:$true] %s131
          %137 = dma.hbm_to_vmem [thread:$0]  %s1, 1920, %s132, [#allocation6], 128, 128, 8
        $region16: #{tpu_custom_call.1} parent=11 // pred_fallthru
          _
        // Predicated region
        $region17: #{tpu_custom_call.1} parent=11 // pred_check
          %p138 = pneg %p84
        $region18: #{tpu_custom_call.1} parent=11 // pred_check_branch
          %140 = sbr.rel (%p138) target = $region20
        $region19: #{tpu_custom_call.1} parent=11 // pred_region
          _
        $region20: #{tpu_custom_call.1} parent=11 // pred_fallthru
          _
      $region12: #{tpu_custom_call.1} parent=5 // pred_fallthru
        _
      %p141 = scmp.lt.s32.totalorder %s16, 2
      // Predicated region
      $region21: #{tpu_custom_call.1} parent=5 // pred_check
        %p142 = pneg %p141
      $region22: #{tpu_custom_call.1} parent=5 // pred_check_branch
        %144 = sbr.rel (%p142) target = $region24
      $region23: #{tpu_custom_call.1} parent=5 // pred_region
        // Predicated region
        $region25: #{tpu_custom_call.1} parent=23 // pred_check
          %p145 = pneg %p36
        $region26: #{tpu_custom_call.1} parent=23 // pred_check_branch
          %147 = sbr.rel (%p145) target = $region28
        $region27: #{tpu_custom_call.1} parent=23 // pred_region
          %s148 = sand.u32 %s26, 1
          %s149 = scalar_lea.sflag [#allocation3], %s148
          %s150 = sand.u32 %s26, 1
          %s151 = smul.addr %s150, 24
          %s152 = scalar_lea.vmem [#allocation2], %s151
          %s153 = smul.u32 3, %s16
          %s154 = ssub.s32 5, %s153
          %p155 = scmp.lt.s32.totalorder %s154, 3
          %s156 = scalar_select %p155, %s154, 3
          %s157 = smul.u32 128, %s156
          %s159 = ssub.s32 384, %s157
          %160 = vsyncadd %s149, %s159
          %p161 = scmp.ne.s32.totalorder 0, %s157
          %s162 = smul.addr %s153, 128
          %s163 = scalar_lea.hbm %s0, %s162
          %s164 = smul.u32 8, %s156
          %s165 = sshll.u32 %s152, 4
          %s166 = int_to_ptr.vmem [resolvable:$true] %s165
          %s167 = sshll.u32 %s164, 4
          %171 = dma.hbm_to_vmem [thread:$0]  (%p161), %s163, %s167, %s166, %s149, 128, 128, 8
        $region28: #{tpu_custom_call.1} parent=23 // pred_fallthru
          _
      $region24: #{tpu_custom_call.1} parent=5 // pred_fallthru
        _
      %p172 = scmp.le.s32.totalorder 1, %s16
      %p173 = scmp.lt.s32.totalorder %s16, 3
      %p174 = pnand %p172, %p173
      %p175 = pneg %p174
      // Predicated region
      $region29: #{tpu_custom_call.1} parent=5 // pred_check
        _
      $region30: #{tpu_custom_call.1} parent=5 // pred_check_branch
        %177 = sbr.rel (%p174) target = $region32
      $region31: #{tpu_custom_call.1} parent=5 // pred_region
        %s178 = ssub.s32 %s16, 1
        %s179 = sand.u32 %s29, 1
        %s180 = scalar_lea.sflag [#allocation3], %s179
        %s181 = sand.u32 %s29, 1
        %s182 = smul.addr %s181, 24
        %s183 = scalar_lea.vmem [#allocation2], %s182
        // Predicated region
        $region33: #{tpu_custom_call.1} parent=31 // pred_check
          %p184 = pneg %p42
        $region34: #{tpu_custom_call.1} parent=31 // pred_check_branch
          %186 = sbr.rel (%p184) target = $region36
        $region35: #{tpu_custom_call.1} parent=31 // pred_region
          %187 = dma.done %s180, 384
        $region36: #{tpu_custom_call.1} parent=31 // pred_fallthru
          _
        // Predicated region
        $region37: #{tpu_custom_call.1} parent=31 // pred_check
          %p188 = pneg %p63
        $region38: #{tpu_custom_call.1} parent=31 // pred_check_branch
          %190 = sbr.rel (%p188) target = $region40
        $region39: #{tpu_custom_call.1} parent=31 // pred_region
          %191 = dma.done [#allocation6], 1920
        $region40: #{tpu_custom_call.1} parent=31 // pred_fallthru
          _
        %s192 = sand.u32 %s29, 1
        %s193 = scalar_lea.sflag [#allocation3], %s192
        %s194 = sand.u32 %s29, 1
        %s195 = smul.addr %s194, 24
        %s196 = scalar_lea.vmem [#allocation2], %s195
        %p197 = pneg %p42
        %p198 = pneg %p39
        %p199 = pneg %p63
        %p200 = pneg %p60
        %p201 = pneg %p84
        %p202 = pneg %p81
        %p203 = pneg %p110
        %p204 = pneg %p107
        %s205 = sand.u32 %s97, 1
        %s206 = scalar_lea.sflag [#allocation4], %s205
        %s207 = sand.u32 %s97, 1
        %s208 = smul.addr %s207, 24
        %s209 = scalar_lea.vmem [#allocation7], %s208
        %s210 = smul.u32 3, %s21
        %s211 = ssub.s32 5, %s210
        %p212 = scmp.lt.s32.totalorder %s211, 3
        %s213 = scalar_select %p212, %s211, 3
        %s214 = smul.u32 128, %s213
        %s215 = smul.u32 3, %s21
        %s216 = ssub.s32 5, %s215
        %p217 = scmp.lt.s32.totalorder %s216, 3
        %s218 = scalar_select %p217, %s216, 3
        %s219 = smul.u32 128, %s218
        %v220 = vld [vmem:[%s183] sm:$0xff]
        %v221 = vld [vmem:[%s183 + $0x8] sm:$0xff]
        %v222 = vld [vmem:[%s183 + $0x10] sm:$0xff]
        %v223 = vld [vmem:[#allocation5] sm:$0xff]
        %v224 = vld [vmem:[#allocation5 + $0x8] sm:$0xff]
        %v225 = vld [vmem:[#allocation5 + $0x10] sm:$0xff]
        %v226 = vld [vmem:[#allocation5 + $0x18] sm:$0xff]
        %v227 = vld [vmem:[#allocation5 + $0x20] sm:$0xff]
        %v228 = vld [vmem:[#allocation5 + $0x28] sm:$0xff]
        %v229 = vld [vmem:[#allocation5 + $0x30] sm:$0xff]
        %v230 = vld [vmem:[#allocation5 + $0x38] sm:$0xff]
        %v231 = vld [vmem:[#allocation5 + $0x40] sm:$0xff]
        %v232 = vld [vmem:[#allocation5 + $0x48] sm:$0xff]
        %v233 = vld [vmem:[#allocation5 + $0x50] sm:$0xff]
        %v234 = vld [vmem:[#allocation5 + $0x58] sm:$0xff]
        %v235 = vld [vmem:[#allocation5 + $0x60] sm:$0xff]
        %v236 = vld [vmem:[#allocation5 + $0x68] sm:$0xff]
        %v237 = vld [vmem:[#allocation5 + $0x70] sm:$0xff]
        %v238 = vld [vmem:[%s2] sm:$0x1]
        %v240 = vlaneseq
        %v241 = vshrl.u32 %v240, 7
        %v242 = vsub.s32 0, %v241
        %v243 = vrot.slane %v238, %v242
        %vm245 = vcmask 982016
        %v247 = vsel %vm245, %v220, 0
        %v250 = vsel %vm245, %v221, 0
        %v253 = vsel %vm245, %v222, 0
        %255 = vmatprep.subr.mxu0 0.0
        %256 = vmatpush1.msra.mxu0 0.0
        %257 = vmatprep.subr.mxu0 0.0
        %258 = vmatpush1.msra.mxu0 %v237
        %259 = vmatprep.subr.mxu0 0.0
        %260 = vmatpush1.msra.mxu0 %v236
        %261 = vmatprep.subr.mxu0 0.0
        %262 = vmatpush1.msra.mxu0 %v235
        %263 = vmatprep.subr.mxu0 0.0
        %264 = vmatpush1.msra.mxu0 %v234
        %265 = vmatprep.subr.mxu0 0.0
        %266 = vmatpush1.msra.mxu0 %v233
        %267 = vmatprep.subr.mxu0 0.0
        %268 = vmatpush1.msra.mxu0 %v232
        %269 = vmatprep.subr.mxu0 0.0
        %270 = vmatpush1.msra.mxu0 %v231
        %271 = vmatprep.subr.mxu0 0.0
        %272 = vmatpush1.msra.mxu0 %v230
        %273 = vmatprep.subr.mxu0 0.0
        %274 = vmatpush1.msra.mxu0 %v229
        %275 = vmatprep.subr.mxu0 0.0
        %276 = vmatpush1.msra.mxu0 %v228
        %277 = vmatprep.subr.mxu0 0.0
        %278 = vmatpush1.msra.mxu0 %v227
        %279 = vmatprep.subr.mxu0 0.0
        %280 = vmatpush1.msra.mxu0 %v226
        %281 = vmatprep.subr.mxu0 0.0
        %282 = vmatpush1.msra.mxu0 %v225
        %283 = vmatprep.subr.mxu0 0.0
        %284 = vmatpush1.msra.mxu0 %v224
        %285 = vmatprep.subr.mxu0 0.0
        %286 = vmatpush1.msra.mxu0 %v223
        %287 = vmatprep.subr.mxu0 0.0
        %288 = vmatpush2.msra.mxu0 0.0
        %289 = vmatprep.subr.mxu0 0.0
        %290 = vmatpush2.msra.mxu0 0.0
        %291 = vmatprep.subr.mxu0 0.0
        %292 = vmatpush2.msra.mxu0 0.0
        %293 = vmatprep.subr.mxu0 0.0
        %294 = vmatpush2.msra.mxu0 0.0
        %295 = vmatprep.subr.mxu0 0.0
        %296 = vmatpush2.msra.mxu0 0.0
        %297 = vmatprep.subr.mxu0 0.0
        %298 = vmatpush2.msra.mxu0 0.0
        %299 = vmatprep.subr.mxu0 0.0
        %300 = vmatpush2.msra.mxu0 0.0
        %301 = vmatprep.subr.mxu0 0.0
        %302 = vmatpush2.msra.mxu0 0.0
        %303 = vmatprep.subr.mxu0 0.0
        %304 = vmatpush2.msra.mxu0 0.0
        %305 = vmatprep.subr.mxu0 0.0
        %306 = vmatpush2.msra.mxu0 0.0
        %307 = vmatprep.subr.mxu0 0.0
        %308 = vmatpush2.msra.mxu0 0.0
        %309 = vmatprep.subr.mxu0 0.0
        %310 = vmatpush2.msra.mxu0 0.0
        %311 = vmatprep.subr.mxu0 0.0
        %312 = vmatpush2.msra.mxu0 0.0
        %313 = vmatprep.subr.mxu0 0.0
        %314 = vmatpush2.msra.mxu0 0.0
        %315 = vmatprep.subr.mxu0 0.0
        %316 = vmatpush2.msra.mxu0 0.0
        %317 = vmatprep.subr.mxu0 0.0
        %318 = vmatpush2.msra.mxu0 0.0
        %319 = vmatprep.mubr.f32.mxu0 0.0
        %320 = vmatmul.mubr.f32.gmra.mxu0 %v247
        %v321 = vpop.f32.mrf.mxu0
        %v322 = vadd.f32 %v243, %v321
        %v323 = vpop.f32.mrf.mxu0
        %324 = vmatprep.mubr.f32.mxu0 0.0
        %325 = vmatmul.mubr.f32.gmra.mxu0 %v250
        %v326 = vpop.f32.mrf.mxu0
        %v327 = vadd.f32 %v243, %v326
        %v328 = vpop.f32.mrf.mxu0
        %329 = vmatprep.mubr.f32.mxu0 0.0
        %330 = vmatmul.mubr.f32.gmra.mxu0 %v253
        %v331 = vpop.f32.mrf.mxu0
        %v332 = vadd.f32 %v243, %v331
        %v333 = vpop.f32.mrf.mxu0
        %334 = vdwg.mxu0
        %335 = vst [vmem:[%s209] sm:$0xff] %v322
        %336 = vst [vmem:[%s209 + $0x8] sm:$0xff] %v327
        %337 = vst [vmem:[%s209 + $0x10] sm:$0xff] %v332
        %s338 = sand.u32 %s97, 1
        %s339 = scalar_lea.sflag [#allocation4], %s338
        %s340 = sand.u32 %s97, 1
        %s341 = smul.addr %s340, 24
        %s342 = scalar_lea.vmem [#allocation7], %s341
        // Predicated region
        $region41: #{tpu_custom_call.1} parent=31 // pred_check
          %p343 = pneg %p107
        $region42: #{tpu_custom_call.1} parent=31 // pred_check_branch
          %345 = sbr.rel (%p343) target = $region44
        $region43: #{tpu_custom_call.1} parent=31 // pred_region
          %s346 = smul.u32 3, %s21
          %s347 = ssub.s32 5, %s346
          %p348 = scmp.lt.s32.totalorder %s347, 3
          %s349 = scalar_select %p348, %s347, 3
          %s350 = smul.u32 128, %s349
          %s352 = ssub.s32 384, %s350
          %353 = vsyncadd %s339, %s352
          %p354 = scmp.ne.s32.totalorder 0, %s350
          %s355 = smul.addr %s346, 128
          %s356 = scalar_lea.hbm %s3, %s355
          %s357 = smul.u32 8, %s349
          %s358 = sshll.u32 %s342, 4
          %s359 = int_to_ptr.vmem [resolvable:$true] %s358
          %s360 = sshll.u32 %s357, 4
          %364 = dma.vmem_to_hbm [thread:$0]  (%p354), %s359, %s360, %s356, %s339, 128, 128, 8
        $region44: #{tpu_custom_call.1} parent=31 // pred_fallthru
          _
      $region32: #{tpu_custom_call.1} parent=5 // pred_fallthru
        _
      %p365 = scmp.le.s32.totalorder 2, %s16
      // Predicated region
      $region45: #{tpu_custom_call.1} parent=5 // pred_check
        %p366 = pneg %p365
      $region46: #{tpu_custom_call.1} parent=5 // pred_check_branch
        %368 = sbr.rel (%p366) target = $region48
      $region47: #{tpu_custom_call.1} parent=5 // pred_region
        %s369 = ssub.s32 %s16, 2
        // Predicated region
        $region49: #{tpu_custom_call.1} parent=47 // pred_check
          %p370 = pneg %p113
        $region50: #{tpu_custom_call.1} parent=47 // pred_check_branch
          %372 = sbr.rel (%p370) target = $region52
        $region51: #{tpu_custom_call.1} parent=47 // pred_region
          %s373 = sand.u32 %s98, 1
          %s374 = scalar_lea.sflag [#allocation4], %s373
          %s375 = sand.u32 %s98, 1
          %s376 = smul.addr %s375, 24
          %s377 = scalar_lea.vmem [#allocation7], %s376
          %378 = dma.done %s374, 384
        $region52: #{tpu_custom_call.1} parent=47 // pred_fallthru
          _
      $region48: #{tpu_custom_call.1} parent=5 // pred_fallthru
        _
    $region6: #{tpu_custom_call.1} parent=1 // loop_footer
      %s20 = sadd.s32 1, %s16
    $region7: #{tpu_custom_call.1} parent=1 // loop_footer_branch
      %15 = sbr.rel target = $region3
    $region8: #{tpu_custom_call.1} parent=1 // loop_exit
      _
    %379 = vsyncpa [#allocation3], 1
    %s380 = scalar_lea.sflag [#allocation3], 1
    %381 = vsyncpa %s380, 1
    %382 = vsyncpa [#allocation6], 1
    %383 = vsyncpa [#allocation4], 1
    %s384 = scalar_lea.sflag [#allocation4], 1
    %385 = vsyncpa %s384, 1

</llo_original>
